<compile_context>
chip_gen: v5e
topology: v5e:2x2
jax: 0.10.0
libtpu: 0.0.40
codegen_flags: <defaults>
</compile_context>

<pallas_src>
import math
import numpy as np

import jax
import jax.numpy as jnp
from jax import lax
from jax.experimental import pallas as pl
from jax.experimental.pallas import tpu as pltpu


# ----------------------------- problem sizes -----------------------------
B = 2            # batch
L = 8            # sequence length (number of cells / positions)
DIM_ENC = 32     # encoder feature dim (C of x)
DIM_SPR = 48     # sprite latent dim
DIM_Z = min(DIM_ENC, DIM_SPR)          # 32
N_SPRITES = 15                          # number of sprites (latents / prototypes)
K0 = 15                                 # rows of the raw factoring matrix
K = K0 + 1                              # factoring rows after blank padding  -> 16
NP1 = N_SPRITES + 1                     # sprites + blank                     -> 16
H = W = 8
CHW = 4 * H * W                         # prototypes(3) + masks(1) channels flattened = 256
NORM = math.sqrt(DIM_Z)
LN_EPS = 1e-5

PACK_W = 128                            # lane-dense block for [probs|logits|logp|pad]
assert 3 * K <= PACK_W
OUT_W = PACK_W + CHW                    # 384 -> single merged output slab (3x128 lanes)


# ----------------------------- Pallas kernel -----------------------------
def selection_kernel(x_ref, wa_ref, ba_ref, latT_ref, fsprite_ref, out_ref):
    # anchors: Linear(dim_enc -> dim_z) + LayerNorm (no affine)
    a = jnp.dot(x_ref[...], wa_ref[...],
                preferred_element_type=jnp.float32) + ba_ref[...]       # (rows, dim_z)
    mu = jnp.mean(a, axis=-1, keepdims=True)
    var = jnp.mean((a - mu) ** 2, axis=-1, keepdims=True)
    a = (a - mu) * lax.rsqrt(var + LN_EPS)

    # logits = anchors @ (factoring @ latents)^T / sqrt(dim_z)
    # (the 1/sqrt(dim_z) scale is pre-folded into latT in the wrapper)
    logits = jnp.dot(a, latT_ref[...], preferred_element_type=jnp.float32)  # (rows, K)

    # softmax / log_softmax over the sprite axis
    m = jnp.max(logits, axis=-1, keepdims=True)
    e = jnp.exp(logits - m)
    denom = jnp.sum(e, axis=-1, keepdims=True)
    # exact reciprocal (approx=True ~2^-12 rel-error would not hold the 1e-5 tol)
    probs = e * pl.reciprocal(denom)
    logp = (logits - m) - jnp.log(denom)

    # S = probs @ (factoring @ sprite)   (factoring pre-folded in wrapper)
    s = jnp.dot(probs, fsprite_ref[...], preferred_element_type=jnp.float32)  # (rows, CHW)

    # Merged, lane-dense output:
    #   lanes [0, 128)   : [probs | logits | log_probs | zero-pad]
    #   lanes [128, 384) : S
    # Both stores are lane-aligned, 128-multiple widths -> unmasked vst; one output DMA.
    rows = probs.shape[0]
    pad = jnp.zeros((rows, PACK_W - 3 * K), jnp.float32)
    out_ref[:, :PACK_W] = jnp.concatenate([probs, logits, logp, pad], axis=-1)
    out_ref[:, PACK_W:] = s


def selection_pallas(x_flat, wa, ba, latT, fact_sprite, *, m_tile=None):
    rows = x_flat.shape[0]
    if m_tile is None:
        # Match the MXU M dimension once there is enough work (v6e/v7x: 256);
        # at small sizes a single tile covering all rows avoids padding waste.
        m_tile = 256 if rows >= 256 else max(8, -(-rows // 8) * 8)
    rows_p = pl.cdiv(rows, m_tile) * m_tile
    if rows_p != rows:
        x_flat = jnp.pad(x_flat, ((0, rows_p - rows), (0, 0)))
    grid = (rows_p // m_tile,)

    out = pl.pallas_call(
        selection_kernel,
        out_shape=jax.ShapeDtypeStruct((rows_p, OUT_W), jnp.float32),
        grid=grid,
        in_specs=[
            pl.BlockSpec((m_tile, DIM_ENC), lambda i: (i, 0)),    # rows stream in
            pl.BlockSpec((DIM_ENC, DIM_Z), lambda i: (0, 0)),     # weights resident
            pl.BlockSpec((1, DIM_Z), lambda i: (0, 0)),
            pl.BlockSpec((DIM_Z, K), lambda i: (0, 0)),
            pl.BlockSpec((K, CHW), lambda i: (0, 0)),
        ],
        out_specs=pl.BlockSpec((m_tile, OUT_W), lambda i: (i, 0)),  # rows stream out
        compiler_params=pltpu.CompilerParams(
            dimension_semantics=("parallel",)),                    # v7x: shard row tiles over 2 TCs
    )(x_flat, wa, ba, latT, fact_sprite)
    return out[:rows]


# ----------------------------- JAX glue -----------------------------
def _layernorm(x, eps=LN_EPS):
    mu = jnp.mean(x, axis=-1, keepdims=True)
    var = jnp.mean((x - mu) ** 2, axis=-1, keepdims=True)
    return (x - mu) * lax.rsqrt(var + eps)


def init_factoring(factoring_np):
    # pad one zero row + one zero column, put a 1 at [-1, -1] (blank -> blank)
    f = jnp.asarray(factoring_np, dtype=jnp.float32)
    f = jnp.concatenate([f, jnp.zeros((1, f.shape[1]), f.dtype)], axis=0)
    f = jnp.concatenate([f, jnp.zeros((f.shape[0], 1), f.dtype)], axis=1)
    f = f.at[-1, -1].set(1.0)
    return f                                                        # (K, NP1)


@jax.jit
def selection_forward(x, prototypes, masks, flat_latents, params):
    """params: dict with wl, bl, wa, ba, blank_latent, factoring (already padded).

    The whole forward (parameter prep + pallas_call + output splits/reshapes) is
    jitted so the glue fuses with / around the kernel instead of being separate
    HLO dispatches.
    """
    Bb, C, Ll = x.shape
    factoring = params["factoring"]

    # --- sprite latent path: Linear(dim_sprites->dim_z) + LN, blank concat ---
    lat = _layernorm(flat_latents @ params["wl"] + params["bl"])     # (N, dim_z)
    lat = jnp.concatenate([lat, params["blank_latent"]], axis=0)     # (N+1, dim_z)
    latT = (factoring @ lat).T * (1.0 / NORM)                        # (dim_z, K), scale folded

    # --- sprite stack: cat([proto, 0], 0) ++ cat([masks, 0], 0) along channel ---
    proto_p = jnp.concatenate([prototypes, jnp.zeros_like(prototypes[:1])], axis=0)
    masks_p = jnp.concatenate([masks, jnp.zeros_like(masks[:1])], axis=0)
    sprite_flat = jnp.concatenate([proto_p, masks_p], axis=1).reshape(NP1, CHW)
    # fold factoring into the sprite slab: S = probs @ (factoring @ sprite)
    fact_sprite = factoring @ sprite_flat                            # (K, CHW)

    # --- flatten x: (B, C, L) -> (B*L, C) ---
    x_flat = jnp.transpose(x, (0, 2, 1)).reshape(Bb * Ll, C)

    out = selection_pallas(
        x_flat, params["wa"], params["ba"][None, :], latT, fact_sprite)

    # split the merged slab (free slices under jit)
    probs = out[:, :K]
    logits = out[:, K:2 * K]
    logp_flat = out[:, 2 * K:3 * K]
    s_flat = out[:, PACK_W:]

    log_probs = logp_flat.reshape(Bb, Ll, K).transpose(1, 0, 2)      # (L, B, K)
    S = s_flat.reshape(Bb, Ll, 4, H, W).transpose(1, 0, 2, 3, 4)     # (L, B, 4, H, W)
    return {"probs": probs, "logits": logits, "log_probs": log_probs, "S": S}


def reference_forward(x, prototypes, masks, flat_latents, params):
    """Pure jnp reference of the same (group=1, training) path."""
    Bb, C, Ll = x.shape
    factoring = params["factoring"]
    lat = _layernorm(flat_latents @ params["wl"] + params["bl"])
    lat = jnp.concatenate([lat, params["blank_latent"]], axis=0)
    latT = (factoring @ lat).T
    x_flat = jnp.transpose(x, (0, 2, 1)).reshape(Bb * Ll, C)
    a = _layernorm(x_flat @ params["wa"] + params["ba"])
    logits = (a @ latT) / NORM
    probs = jax.nn.softmax(logits, axis=-1)
    log_probs = jax.nn.log_softmax(logits, axis=-1).reshape(Bb, Ll, K).transpose(1, 0, 2)
    pf = probs @ factoring
    proto_p = jnp.concatenate([prototypes, jnp.zeros_like(prototypes[:1])], axis=0)
    masks_p = jnp.concatenate([masks, jnp.zeros_like(masks[:1])], axis=0)
    sprite = jnp.concatenate([proto_p, masks_p], axis=1).reshape(NP1, CHW)
    S = (pf @ sprite).reshape(Bb, Ll, 4, H, W).transpose(1, 0, 2, 3, 4)
    return {"probs": probs, "logits": logits, "log_probs": log_probs, "S": S}


# ----------------------------- main -----------------------------
if __name__ == "__main__":
    key = jax.random.PRNGKey(0)
    ks = jax.random.split(key, 10)

    # inputs
    x = jax.random.normal(ks[0], (B, DIM_ENC, L), dtype=jnp.float32)
    flat_latents = jax.random.normal(ks[1], (N_SPRITES, DIM_SPR), dtype=jnp.float32)
    prototypes = jax.random.uniform(ks[2], (N_SPRITES, 3, H, W), dtype=jnp.float32)
    masks = jax.random.uniform(ks[3], (N_SPRITES, 1, H, W), dtype=jnp.float32)

    # deterministic parameter init (synthetic; shapes match the module's __init__)
    params = {
        "wl": jax.random.normal(ks[4], (DIM_SPR, DIM_Z), dtype=jnp.float32) * 0.1,
        "bl": jax.random.normal(ks[5], (DIM_Z,), dtype=jnp.float32) * 0.1,
        "wa": jax.random.normal(ks[6], (DIM_ENC, DIM_Z), dtype=jnp.float32) * 0.1,
        "ba": jax.random.normal(ks[7], (DIM_Z,), dtype=jnp.float32) * 0.1,
        "blank_latent": jax.random.normal(ks[8], (1, DIM_Z), dtype=jnp.float32),
    }
    # raw factoring (K0, N_SPRITES): deterministic one-hot-ish pattern
    fact_np = np.zeros((K0, N_SPRITES), dtype=np.float32)
    for i in range(K0):
        fact_np[i, i % N_SPRITES] = 1.0
    params["factoring"] = init_factoring(fact_np)

    out = selection_forward(x, prototypes, masks, flat_latents, params)
    jax.block_until_ready(out)

    ref = reference_forward(x, prototypes, masks, flat_latents, params)
    for name in ("probs", "logits", "log_probs", "S"):
        np.testing.assert_allclose(np.asarray(out[name]), np.asarray(ref[name]),
                                   rtol=1e-5, atol=1e-5)

    assert out["probs"].shape == (B * L, K)
    assert out["logits"].shape == (B * L, K)
    assert out["log_probs"].shape == (L, B, K)
    assert out["S"].shape == (L, B, 4, H, W)

    print("KERNEL_OK")
</pallas_src>

<mosaic_0001>
module attributes {stable_mosaic.version = 11 : i64} {
  func.func @selection_kernel(%arg0: i32, %arg1: memref<16x32xf32, #tpu.memory_space<vmem>>, %arg2: memref<32x32xf32, #tpu.memory_space<vmem>>, %arg3: memref<1x32xf32, #tpu.memory_space<vmem>>, %arg4: memref<32x16xf32, #tpu.memory_space<vmem>>, %arg5: memref<16x256xf32, #tpu.memory_space<vmem>>, %arg6: memref<16x384xf32, #tpu.memory_space<vmem>>) attributes {dimension_semantics = [#tpu.dimension_semantics<parallel>], iteration_bounds = array<i64: 1>, scalar_prefetch = 0 : i64, scratch_operands = 0 : i64, tpu.core_type = #tpu.core_type<tc>, window_params = [{transform_indices = @transform_0, window_bounds = array<i64: 16, 32>}, {pipeline_mode = #tpu.pipeline_mode<synchronous>, transform_indices = @transform_1, window_bounds = array<i64: 32, 32>}, {pipeline_mode = #tpu.pipeline_mode<synchronous>, transform_indices = @transform_2, window_bounds = array<i64: 1, 32>}, {pipeline_mode = #tpu.pipeline_mode<synchronous>, transform_indices = @transform_3, window_bounds = array<i64: 32, 16>}, {pipeline_mode = #tpu.pipeline_mode<synchronous>, transform_indices = @transform_4, window_bounds = array<i64: 16, 256>}, {transform_indices = @transform_5, window_bounds = array<i64: 16, 384>}]} {
    %c0 = arith.constant 0 : index
    %c0_0 = arith.constant 0 : index
    %0 = vector.load %arg1[%c0, %c0_0] : memref<16x32xf32, #tpu.memory_space<vmem>>, vector<16x32xf32>
    %c0_1 = arith.constant 0 : index
    %c0_2 = arith.constant 0 : index
    %1 = vector.load %arg2[%c0_1, %c0_2] : memref<32x32xf32, #tpu.memory_space<vmem>>, vector<32x32xf32>
    %cst = arith.constant dense<0.000000e+00> : vector<16x32xf32>
    %2 = tpu.matmul %0, %1, %cst {dimension_numbers = #tpu.dot_dimension_numbers<[1], [0], [0], [1], [0, 0, 1, 1], [], []>} : vector<16x32xf32>, vector<32x32xf32>, vector<16x32xf32> -> vector<16x32xf32>
    %c0_3 = arith.constant 0 : index
    %c0_4 = arith.constant 0 : index
    %3 = vector.load %arg3[%c0_3, %c0_4] : memref<1x32xf32, #tpu.memory_space<vmem>>, vector<1x32xf32>
    %4 = vector.broadcast %3 : vector<1x32xf32> to vector<16x32xf32>
    %5 = arith.addf %2, %4 : vector<16x32xf32>
    %cst_5 = arith.constant dense<0.000000e+00> : vector<16xf32>
    %6 = vector.multi_reduction <add>, %5, %cst_5 [1] : vector<16x32xf32> to vector<16xf32>
    %7 = vector.shape_cast %6 : vector<16xf32> to vector<16x1xf32>
    %cst_6 = arith.constant 3.200000e+01 : f32
    %8 = vector.broadcast %cst_6 : f32 to vector<16x1xf32>
    %9 = arith.divf %7, %8 : vector<16x1xf32>
    %10 = vector.broadcast %9 : vector<16x1xf32> to vector<16x32xf32>
    %11 = arith.subf %5, %10 : vector<16x32xf32>
    %12 = arith.mulf %11, %11 : vector<16x32xf32>
    %cst_7 = arith.constant dense<0.000000e+00> : vector<16xf32>
    %13 = vector.multi_reduction <add>, %12, %cst_7 [1] : vector<16x32xf32> to vector<16xf32>
    %14 = vector.shape_cast %13 : vector<16xf32> to vector<16x1xf32>
    %cst_8 = arith.constant 3.200000e+01 : f32
    %15 = vector.broadcast %cst_8 : f32 to vector<16x1xf32>
    %16 = arith.divf %14, %15 : vector<16x1xf32>
    %17 = vector.broadcast %9 : vector<16x1xf32> to vector<16x32xf32>
    %18 = arith.subf %5, %17 : vector<16x32xf32>
    %cst_9 = arith.constant 9.99999974E-6 : f32
    %19 = vector.broadcast %cst_9 : f32 to vector<16x1xf32>
    %20 = arith.addf %16, %19 : vector<16x1xf32>
    %21 = math.rsqrt %20 : vector<16x1xf32>
    %22 = vector.broadcast %21 : vector<16x1xf32> to vector<16x32xf32>
    %23 = arith.mulf %18, %22 : vector<16x32xf32>
    %c0_10 = arith.constant 0 : index
    %c0_11 = arith.constant 0 : index
    %24 = vector.load %arg4[%c0_10, %c0_11] : memref<32x16xf32, #tpu.memory_space<vmem>>, vector<32x16xf32>
    %cst_12 = arith.constant dense<0.000000e+00> : vector<16x16xf32>
    %25 = tpu.matmul %23, %24, %cst_12 {dimension_numbers = #tpu.dot_dimension_numbers<[1], [0], [0], [1], [0, 0, 1, 1], [], []>} : vector<16x32xf32>, vector<32x16xf32>, vector<16x16xf32> -> vector<16x16xf32>
    %cst_13 = arith.constant dense<0xFF800000> : vector<16xf32>
    %26 = vector.multi_reduction <maximumf>, %25, %cst_13 [1] : vector<16x16xf32> to vector<16xf32>
    %27 = vector.shape_cast %26 : vector<16xf32> to vector<16x1xf32>
    %28 = vector.broadcast %27 : vector<16x1xf32> to vector<16x16xf32>
    %29 = arith.subf %25, %28 : vector<16x16xf32>
    %30 = math.exp %29 : vector<16x16xf32>
    %cst_14 = arith.constant dense<0.000000e+00> : vector<16xf32>
    %31 = vector.multi_reduction <add>, %30, %cst_14 [1] : vector<16x16xf32> to vector<16xf32>
    %32 = vector.shape_cast %31 : vector<16xf32> to vector<16x1xf32>
    %33 = tpu.reciprocal %32 : vector<16x1xf32> -> vector<16x1xf32>
    %34 = vector.broadcast %33 : vector<16x1xf32> to vector<16x16xf32>
    %35 = arith.mulf %30, %34 : vector<16x16xf32>
    %36 = vector.broadcast %27 : vector<16x1xf32> to vector<16x16xf32>
    %37 = arith.subf %25, %36 : vector<16x16xf32>
    %38 = math.log %32 : vector<16x1xf32>
    %39 = vector.broadcast %38 : vector<16x1xf32> to vector<16x16xf32>
    %40 = arith.subf %37, %39 : vector<16x16xf32>
    %c0_15 = arith.constant 0 : index
    %c0_16 = arith.constant 0 : index
    %41 = vector.load %arg5[%c0_15, %c0_16] : memref<16x256xf32, #tpu.memory_space<vmem>>, vector<16x256xf32>
    %cst_17 = arith.constant dense<0.000000e+00> : vector<16x256xf32>
    %42 = tpu.matmul %35, %41, %cst_17 {dimension_numbers = #tpu.dot_dimension_numbers<[1], [0], [0], [1], [0, 0, 1, 1], [], []>} : vector<16x16xf32>, vector<16x256xf32>, vector<16x256xf32> -> vector<16x256xf32>
    %cst_18 = arith.constant 0.000000e+00 : f32
    %43 = vector.broadcast %cst_18 : f32 to vector<16x80xf32>
    %44 = tpu.concatenate %35, %25, %40, %43 in 1 : vector<16x16xf32>, vector<16x16xf32>, vector<16x16xf32>, vector<16x80xf32> -> vector<16x128xf32>
    %c0_19 = arith.constant 0 : index
    %c0_20 = arith.constant 0 : index
    %45 = vector.load %arg6[%c0_19, %c0_20] : memref<16x384xf32, #tpu.memory_space<vmem>>, vector<16x128xf32>
    tpu.vector_store %arg6[%c0_19, %c0_20], %44 {strides = array<i32>} : memref<16x384xf32, #tpu.memory_space<vmem>>, vector<16x128xf32>,
    %c0_21 = arith.constant 0 : index
    %c128 = arith.constant 128 : index
    %46 = vector.load %arg6[%c0_21, %c128] : memref<16x384xf32, #tpu.memory_space<vmem>>, vector<16x256xf32>
    tpu.vector_store %arg6[%c0_21, %c128], %42 {strides = array<i32>} : memref<16x384xf32, #tpu.memory_space<vmem>>, vector<16x256xf32>,
    return
  }
  func.func @transform_0(%arg0: i32) -> (i32, i32) {
    %c0_i32 = arith.constant 0 : i32
    %c0_i32_0 = arith.constant 0 : i32
    return %arg0, %c0_i32 : i32, i32
  }
  func.func @transform_1(%arg0: i32) -> (i32, i32) {
    %c0_i32 = arith.constant 0 : i32
    %c0_i32_0 = arith.constant 0 : i32
    %c0_i32_1 = arith.constant 0 : i32
    return %c0_i32, %c0_i32_0 : i32, i32
  }
  func.func @transform_2(%arg0: i32) -> (i32, i32) {
    %c0_i32 = arith.constant 0 : i32
    %c0_i32_0 = arith.constant 0 : i32
    %c0_i32_1 = arith.constant 0 : i32
    return %c0_i32, %c0_i32_0 : i32, i32
  }
  func.func @transform_3(%arg0: i32) -> (i32, i32) {
    %c0_i32 = arith.constant 0 : i32
    %c0_i32_0 = arith.constant 0 : i32
    %c0_i32_1 = arith.constant 0 : i32
    return %c0_i32, %c0_i32_0 : i32, i32
  }
  func.func @transform_4(%arg0: i32) -> (i32, i32) {
    %c0_i32 = arith.constant 0 : i32
    %c0_i32_0 = arith.constant 0 : i32
    %c0_i32_1 = arith.constant 0 : i32
    return %c0_i32, %c0_i32_0 : i32, i32
  }
  func.func @transform_5(%arg0: i32) -> (i32, i32) {
    %c0_i32 = arith.constant 0 : i32
    %c0_i32_0 = arith.constant 0 : i32
    return %arg0, %c0_i32 : i32, i32
  }
}

</mosaic_0001>

<llo_original>
// kernel: selection_forward.1
$region0: #{selection_forward.1}
  #allocation0 [shape = 'u32[]', space=smem, size = 0x4, offset = 0x4, fixed_abs, tag = 'smem constant byte address 0x4 - core index']
  #allocation1 [shape = 'u32[72,128]{1,0:T(1,128)}', space=vmem, size = 0x9000, scoped, tag = 'internal scratch']
  %s0 = inlined_call_operand.vmem [shape: f32[16,32], index: 0, kind: input, shape index: {}]
  %s1 = inlined_call_operand.vmem [shape: f32[32,32], index: 1, kind: input, shape index: {}]
  %s2 = inlined_call_operand.vmem [shape: f32[1,32], index: 2, kind: input, shape index: {}]
  %s3 = inlined_call_operand.vmem [shape: f32[32,16], index: 3, kind: input, shape index: {}]
  %s4 = inlined_call_operand.vmem [shape: f32[16,256], index: 4, kind: input, shape index: {}]
  %s5 = inlined_call_operand.vmem [shape: f32[16,384], index: 5, kind: output, shape index: {}]
  %s6 = sld [smem:[#allocation0]]
  $region30: #{selection_forward.1} parent=0
    _
  %s8 = ssub.s32 1, %s6
  %s9 = scalar_select 0, %s8, %s6
  // Predicated region
  $region2: #{selection_forward.1} parent=0 // pred_check
    _
  $region3: #{selection_forward.1} parent=0 // pred_check_branch
    %11 = sbr.rel (0) target = $region5
  $region4: #{selection_forward.1} parent=0 // pred_region
    _
  $region5: #{selection_forward.1} parent=0 // pred_fallthru
    _
  // Predicated region
  $region6: #{selection_forward.1} parent=0 // pred_check
    _
  $region7: #{selection_forward.1} parent=0 // pred_check_branch
    %13 = sbr.rel (0) target = $region9
  $region8: #{selection_forward.1} parent=0 // pred_region
    _
  $region9: #{selection_forward.1} parent=0 // pred_fallthru
    _
  // Predicated region
  $region10: #{selection_forward.1} parent=0 // pred_check
    _
  $region11: #{selection_forward.1} parent=0 // pred_check_branch
    %15 = sbr.rel (0) target = $region13
  $region12: #{selection_forward.1} parent=0 // pred_region
    _
  $region13: #{selection_forward.1} parent=0 // pred_fallthru
    _
  // Predicated region
  $region14: #{selection_forward.1} parent=0 // pred_check
    _
  $region15: #{selection_forward.1} parent=0 // pred_check_branch
    %17 = sbr.rel (0) target = $region17
  $region16: #{selection_forward.1} parent=0 // pred_region
    _
  $region17: #{selection_forward.1} parent=0 // pred_fallthru
    _
  // Predicated region
  $region18: #{selection_forward.1} parent=0 // pred_check
    _
  $region19: #{selection_forward.1} parent=0 // pred_check_branch
    %19 = sbr.rel (0) target = $region21
  $region20: #{selection_forward.1} parent=0 // pred_region
    _
  $region21: #{selection_forward.1} parent=0 // pred_fallthru
    _
  %v20 = vld [vmem:[%s0] sm:$0xff]
  %v21 = vld [vmem:[%s0 + $0x8] sm:$0xff]
  %v22 = vld [vmem:[%s1] sm:$0xff]
  %v23 = vld [vmem:[%s1 + $0x8] sm:$0xff]
  %v24 = vld [vmem:[%s1 + $0x10] sm:$0xff]
  %v25 = vld [vmem:[%s1 + $0x18] sm:$0xff]
  %v26 = vld [vmem:[%s2] sm:$0x1]
  %v28 = vperm.slane %v26, 0
  %vm30 = vcmask 261120
  %v32 = vsel %vm30, %v20, 0
  %v35 = vsel %vm30, %v21, 0
  %37 = vmatpush.msra.mxu0 0.0
  %38 = vmatpush.msra.mxu0 0.0
  %39 = vmatpush.msra.mxu0 0.0
  %40 = vmatpush.msra.mxu0 0.0
  %41 = vmatpush.msra.mxu0 0.0
  %42 = vmatpush.msra.mxu0 0.0
  %43 = vmatpush.msra.mxu0 0.0
  %44 = vmatpush.msra.mxu0 0.0
  %45 = vmatpush.msra.mxu0 0.0
  %46 = vmatpush.msra.mxu0 0.0
  %47 = vmatpush.msra.mxu0 0.0
  %48 = vmatpush.msra.mxu0 0.0
  %49 = vmatpush.msra.mxu0 %v25
  %50 = vmatpush.msra.mxu0 %v24
  %51 = vmatpush.msra.mxu0 %v23
  %52 = vmatpush.msra.mxu0 %v22
  %53 = vmatmul.f32.gmra.mxu0 %v32
  %v54 = vpop.f32.mrf.mxu0
  %v55 = vadd.f32 %v28, %v54
  %56 = vmatmul.f32.gmra.mxu0 %v35
  %v57 = vpop.f32.mrf.mxu0
  %v58 = vadd.f32 %v28, %v57
  %59 = vdwg.mxu0
  %v60 = vsel %vm30, %v55, 0.0
  %61 = vadd.xlane.f32.xlu0 %v60
  %v62 = vpop.xlane.xlu0 %61
  %v63 = vsel %vm30, %v58, 0.0
  %64 = vadd.xlane.f32.xlu0 %v63
  %v65 = vpop.xlane.xlu0 %64
  %v66 = vrcp.pop 32.0
  %v67 = vmul.f32 32.0, %v66
  %v68 = vsub.f32 1.0, %v67
  %v69 = vmul.f32 %v66, %v68
  %v70 = vadd.f32 %v66, %v69
  %vm71 = vweird.f32 %v66
  %v72 = vsel %vm71, %v66, %v70
  %v73 = vmul.f32 %v62, %v72
  %v74 = vmul.f32 %v65, %v72
  %v75 = vsub.f32 %v55, %v73
  %v76 = vsub.f32 %v58, %v74
  %v77 = vmul.f32 %v75, %v75
  %v78 = vmul.f32 %v76, %v76
  %v79 = vsel %vm30, %v77, 0.0
  %80 = vadd.xlane.f32.xlu0 %v79
  %v81 = vpop.xlane.xlu0 %80
  %v82 = vsel %vm30, %v78, 0.0
  %83 = vadd.xlane.f32.xlu0 %v82
  %v84 = vpop.xlane.xlu0 %83
  %v85 = vmul.f32 %v81, %v72
  %v86 = vmul.f32 %v84, %v72
  %v87 = vadd.f32 %v85, 1e-05
  %v88 = vadd.f32 %v86, 1e-05
  %v89 = vrsqrt.pop %v87
  %v90 = vmul.f32 %v89, %v87
  %v91 = vmul.f32 %v90, %v89
  %v92 = vmul.f32 0.5, %v91
  %v93 = vsub.f32 1.5, %v92
  %v94 = vmul.f32 %v89, %v93
  %vm95 = vweird.f32 %v87
  %vm96 = vweird.f32 %v89
  %vm97 = vmor %vm95, %vm96
  %v98 = vsel %vm97, %v89, %v94
  %v99 = vrsqrt.pop %v88
  %v100 = vmul.f32 %v99, %v88
  %v101 = vmul.f32 %v100, %v99
  %v102 = vmul.f32 0.5, %v101
  %v103 = vsub.f32 1.5, %v102
  %v104 = vmul.f32 %v99, %v103
  %vm105 = vweird.f32 %v88
  %vm106 = vweird.f32 %v99
  %vm107 = vmor %vm105, %vm106
  %v108 = vsel %vm107, %v99, %v104
  %v109 = vmul.f32 %v75, %v98
  %v110 = vmul.f32 %v76, %v108
  %v111 = vld [vmem:[%s3] sm:$0xff]
  %v112 = vld [vmem:[%s3 + $0x8] sm:$0xff]
  %v113 = vld [vmem:[%s3 + $0x10] sm:$0xff]
  %v114 = vld [vmem:[%s3 + $0x18] sm:$0xff]
  %v116 = vsel %vm30, %v109, 0
  %v119 = vsel %vm30, %v110, 0
  %121 = vmatpush.msra.mxu0 0.0
  %122 = vmatpush.msra.mxu0 0.0
  %123 = vmatpush.msra.mxu0 0.0
  %124 = vmatpush.msra.mxu0 0.0
  %125 = vmatpush.msra.mxu0 0.0
  %126 = vmatpush.msra.mxu0 0.0
  %127 = vmatpush.msra.mxu0 0.0
  %128 = vmatpush.msra.mxu0 0.0
  %129 = vmatpush.msra.mxu0 0.0
  %130 = vmatpush.msra.mxu0 0.0
  %131 = vmatpush.msra.mxu0 0.0
  %132 = vmatpush.msra.mxu0 0.0
  %133 = vmatpush.msra.mxu0 %v114
  %134 = vmatpush.msra.mxu0 %v113
  %135 = vmatpush.msra.mxu0 %v112
  %136 = vmatpush.msra.mxu0 %v111
  %137 = vmatmul.f32.gmra.mxu0 %v116
  %v138 = vpop.f32.mrf.mxu0
  %v139 = vadd.f32 0.0, %v138
  %140 = vmatmul.f32.gmra.mxu0 %v119
  %v141 = vpop.f32.mrf.mxu0
  %v142 = vadd.f32 0.0, %v141
  %143 = vdwg.mxu0
  %vm144 = vcmask 130048
  %v145 = vsel %vm144, %v139, -inf
  %146 = vmax.xlane.f32.xlu0 %v145
  %v147 = vpop.xlane.xlu0 %146
  %v148 = vsel %vm144, %v142, -inf
  %149 = vmax.xlane.f32.xlu0 %v148
  %v150 = vpop.xlane.xlu0 %149
  %v151 = vsub.f32 %v139, %v147
  %v152 = vsub.f32 %v142, %v150
  %v153 = vmul.f32 %v151, 1.442695
  %v154 = vpow.pop %v153
  %v155 = vmul.f32 %v152, 1.442695
  %v156 = vpow.pop %v155
  %v157 = vsel %vm144, %v154, 0.0
  %158 = vadd.xlane.f32.xlu0 %v157
  %v159 = vpop.xlane.xlu0 %158
  %v160 = vsel %vm144, %v156, 0.0
  %161 = vadd.xlane.f32.xlu0 %v160
  %v162 = vpop.xlane.xlu0 %161
  %v163 = vrcp.pop %v159
  %v164 = vmul.f32 %v159, %v163
  %v165 = vsub.f32 1.0, %v164
  %v166 = vmul.f32 %v163, %v165
  %v167 = vadd.f32 %v163, %v166
  %vm168 = vweird.f32 %v159
  %vm169 = vweird.f32 %v163
  %vm170 = vmor %vm168, %vm169
  %v171 = vsel %vm170, %v163, %v167
  %v172 = vand.u32 2147483647, %v159
  %vm173 = vcmp.eq.f32.partialorder %v172, 8.507059e+37
  %v174 = vand.u32 %v159, 2147483648
  %v175 = vor.u32 1.1754944e-38, %v174
  %v176 = vsel %vm173, %v175, %v171
  %v177 = vrcp.pop %v162
  %v178 = vmul.f32 %v162, %v177
  %v179 = vsub.f32 1.0, %v178
  %v180 = vmul.f32 %v177, %v179
  %v181 = vadd.f32 %v177, %v180
  %vm182 = vweird.f32 %v162
  %vm183 = vweird.f32 %v177
  %vm184 = vmor %vm182, %vm183
  %v185 = vsel %vm184, %v177, %v181
  %v186 = vand.u32 2147483647, %v162
  %vm187 = vcmp.eq.f32.partialorder %v186, 8.507059e+37
  %v188 = vand.u32 %v162, 2147483648
  %v189 = vor.u32 1.1754944e-38, %v188
  %v190 = vsel %vm187, %v189, %v185
  %v191 = vmul.f32 %v154, %v176
  %v192 = vmul.f32 %v156, %v190
  %v193 = vlog2.pop %v159
  %v194 = vmul.f32 %v193, 0.6931472
  %v195 = vlog2.pop %v162
  %v196 = vmul.f32 %v195, 0.6931472
  %v197 = vsub.f32 %v151, %v194
  %v198 = vsub.f32 %v152, %v196
  %v199 = vld [vmem:[%s4] sm:$0xff]
  %v200 = vld [vmem:[%s4 + $0x8] sm:$0xff]
  %v201 = vld [vmem:[%s4 + $0x10] sm:$0xff]
  %v202 = vld [vmem:[%s4 + $0x18] sm:$0xff]
  %v204 = vsel %vm144, %v191, 0
  %v207 = vsel %vm144, %v192, 0
  %209 = vmatpush.msra.mxu0 0.0
  %210 = vmatpush.msra.mxu0 0.0
  %211 = vmatpush.msra.mxu0 0.0
  %212 = vmatpush.msra.mxu0 0.0
  %213 = vmatpush.msra.mxu0 0.0
  %214 = vmatpush.msra.mxu0 0.0
  %215 = vmatpush.msra.mxu0 0.0
  %216 = vmatpush.msra.mxu0 0.0
  %217 = vmatpush.msra.mxu0 0.0
  %218 = vmatpush.msra.mxu0 0.0
  %219 = vmatpush.msra.mxu0 0.0
  %220 = vmatpush.msra.mxu0 0.0
  %221 = vmatpush.msra.mxu0 0.0
  %222 = vmatpush.msra.mxu0 0.0
  %223 = vmatpush.msra.mxu0 %v201
  %224 = vmatpush.msra.mxu0 %v199
  %225 = vmatmul.f32.gmra.mxu0 %v204
  %v226 = vpop.f32.mrf.mxu0
  %v227 = vadd.f32 0.0, %v226
  %228 = vmatmul.f32.gmra.mxu0 %v207
  %v229 = vpop.f32.mrf.mxu0
  %v230 = vadd.f32 0.0, %v229
  %231 = vdwg.mxu0
  %232 = vmatpush.msra.mxu0 0.0
  %233 = vmatpush.msra.mxu0 0.0
  %234 = vmatpush.msra.mxu0 0.0
  %235 = vmatpush.msra.mxu0 0.0
  %236 = vmatpush.msra.mxu0 0.0
  %237 = vmatpush.msra.mxu0 0.0
  %238 = vmatpush.msra.mxu0 0.0
  %239 = vmatpush.msra.mxu0 0.0
  %240 = vmatpush.msra.mxu0 0.0
  %241 = vmatpush.msra.mxu0 0.0
  %242 = vmatpush.msra.mxu0 0.0
  %243 = vmatpush.msra.mxu0 0.0
  %244 = vmatpush.msra.mxu0 0.0
  %245 = vmatpush.msra.mxu0 0.0
  %246 = vmatpush.msra.mxu0 %v202
  %247 = vmatpush.msra.mxu0 %v200
  %248 = vmatmul.f32.gmra.mxu0 %v204
  %v249 = vpop.f32.mrf.mxu0
  %v250 = vadd.f32 0.0, %v249
  %251 = vmatmul.f32.gmra.mxu0 %v207
  %v252 = vpop.f32.mrf.mxu0
  %v253 = vadd.f32 0.0, %v252
  %254 = vdwg.mxu0
  %257 = vrot.lane.b32.xlu0 %v139, 16
  %v258 = vpop.permute.xlu0 %257
  %259 = vrot.lane.b32.xlu0 %v142, 16
  %v260 = vpop.permute.xlu0 %259
  %265 = vrot.lane.b32.xlu0 %v197, 32
  %v266 = vpop.permute.xlu0 %265
  %267 = vrot.lane.b32.xlu0 %v198, 32
  %v268 = vpop.permute.xlu0 %267
  %v271 = vsel %vm144, %v191, %v258
  %v272 = vsel %vm144, %v192, %v260
  %v273 = vsel %vm30, %v271, %v266
  %v274 = vsel %vm30, %v272, %v268
  %vm275 = vcmask 392192
  %v276 = vsel %vm275, %v273, 0.0
  %v277 = vsel %vm275, %v274, 0.0
  %278 = vst [vmem:[%s5] sm:$0xff] %v276
  %279 = vst [vmem:[%s5 + $0x18] sm:$0xff] %v277
  %280 = vst [vmem:[%s5 + $0x8] sm:$0xff] %v227
  %281 = vst [vmem:[%s5 + $0x10] sm:$0xff] %v250
  %282 = vst [vmem:[%s5 + $0x20] sm:$0xff] %v230
  %283 = vst [vmem:[%s5 + $0x28] sm:$0xff] %v253
  // Predicated region
  $region22: #{selection_forward.1} parent=0 // pred_check
    _
  $region23: #{selection_forward.1} parent=0 // pred_check_branch
    %285 = sbr.rel (0) target = $region25
  $region24: #{selection_forward.1} parent=0 // pred_region
    _
  $region25: #{selection_forward.1} parent=0 // pred_fallthru
    _
  // Predicated region
  $region26: #{selection_forward.1} parent=0 // pred_check
    _
  $region27: #{selection_forward.1} parent=0 // pred_check_branch
    %287 = sbr.rel (0) target = $region29
  $region28: #{selection_forward.1} parent=0 // pred_region
    _
  $region29: #{selection_forward.1} parent=0 // pred_fallthru
    _

</llo_original>
